<compile_context>
chip_gen: v7x
topology: tpu7x:2x2x1
jax: 0.10.0
libtpu: 0.0.40
codegen_flags: <defaults>
</compile_context>

<pallas_src>
import jax
import jax.numpy as jnp
from jax.experimental import pallas as pl
from jax.experimental.pallas import tpu as pltpu

IN_FEATURES = 28 * 28      # 784; last dim of the x block == full array dim
H1, H2, H3 = 256, 128, 64
NUM_CLASSES = 10
OUT_PAD = 128              # lane-dense tail layers / output store
TILE_B_MAX = 512           # ~85% of HBM roofline vs ~63% at 256-wide tiles


def mlp_kernel(x_ref,
               w1_ref, b1_ref,
               w2_ref, b2_ref,
               w3_ref, b3_ref,
               w4_ref, b4_ref,
               o_ref):
    x = x_ref[...]                                    # (tile_b, 784) bf16

    # Layer 1: 784 -> 256, ReLU  (bf16 MXU, f32 accumulate)
    h = jnp.dot(x, w1_ref[...],
                preferred_element_type=jnp.float32) + b1_ref[...]
    h = jnp.maximum(h, 0.0)

    # Layer 2: 256 -> 128, ReLU
    h = jnp.dot(h.astype(jnp.bfloat16), w2_ref[...],
                preferred_element_type=jnp.float32) + b2_ref[...]
    h = jnp.maximum(h, 0.0)

    # Layer 3: 128 -> 128 (cols >= 64 are zero-padded; ReLU(0)=0 keeps it exact)
    h = jnp.dot(h.astype(jnp.bfloat16), w3_ref[...],
                preferred_element_type=jnp.float32) + b3_ref[...]
    h = jnp.maximum(h, 0.0)

    # Layer 4: 128 -> 128 (only the first 10 columns are real logits)
    logits = jnp.dot(h.astype(jnp.bfloat16), w4_ref[...],
                     preferred_element_type=jnp.float32) + b4_ref[...]

    # LogSoftmax over the 10 real classes only: mask padded lanes to -inf.
    col = jax.lax.broadcasted_iota(jnp.int32, logits.shape, 1)
    valid = col < NUM_CLASSES
    masked = jnp.where(valid, logits, -jnp.inf)
    m = jnp.max(masked, axis=-1, keepdims=True)           # finite (valid lanes)
    z = masked - m                                         # -inf on padded lanes
    lse = jnp.log(jnp.sum(jnp.exp(z), axis=-1, keepdims=True))
    out = jnp.where(valid, z - lse, 0.0)
    o_ref[...] = out.astype(o_ref.dtype)


def prepare_params(params):
    """One-time weight preparation: bf16 cast + padding of the tail layers to
    128 output lanes.  Do this once at init, not per forward call."""
    (w1, b1), (w2, b2), (w3, b3), (w4, b4) = params
    w1_p = w1.astype(jnp.bfloat16)                                    # (784,256)
    b1_p = b1.reshape(1, H1).astype(jnp.float32)
    w2_p = w2.astype(jnp.bfloat16)                                    # (256,128)
    b2_p = b2.reshape(1, H2).astype(jnp.float32)
    w3_p = jnp.zeros((H2, OUT_PAD), jnp.bfloat16).at[:, :H3].set(
        w3.astype(jnp.bfloat16))
    b3_p = jnp.zeros((1, OUT_PAD), jnp.float32).at[:, :H3].set(
        b3.reshape(1, H3).astype(jnp.float32))
    w4_p = jnp.zeros((OUT_PAD, OUT_PAD), jnp.bfloat16).at[:H3, :NUM_CLASSES].set(
        w4.astype(jnp.bfloat16))
    b4_p = jnp.zeros((1, OUT_PAD), jnp.float32).at[:, :NUM_CLASSES].set(
        b4.reshape(1, NUM_CLASSES).astype(jnp.float32))
    return (w1_p, b1_p, w2_p, b2_p, w3_p, b3_p, w4_p, b4_p)


def _choose_batch_tiling(B):
    """tile_b is a multiple of 16 (bf16 sublane packing), capped at TILE_B_MAX,
    and chosen so there are >= 2 grid steps whenever B allows (v7x megacore)."""
    b16 = ((B + 15) // 16) * 16
    if b16 <= 16:
        return 16, 16
    tile = min(TILE_B_MAX, ((b16 // 2 + 15) // 16) * 16)
    b_pad = ((b16 + tile - 1) // tile) * tile
    return tile, b_pad


def net_forward(x, prepared):
    """x: (B, 784). Returns (B, 10) float32 log-probabilities."""
    w1_p, b1_p, w2_p, b2_p, w3_p, b3_p, w4_p, b4_p = prepared
    B, F = x.shape
    assert F == IN_FEATURES

    tile_b, B_pad = _choose_batch_tiling(B)
    n_tiles = B_pad // tile_b

    # bf16 cast + batch-only padding, fused into one op (no full re-materialize
    # of a feature-padded copy in HBM).
    x_bf16 = x.astype(jnp.bfloat16)
    if B_pad != B:
        x_bf16 = jnp.pad(x_bf16, ((0, B_pad - B), (0, 0)))

    const = lambda i: (0, 0)            # weights/biases resident across tiles
    flops = 2 * B_pad * (IN_FEATURES * H1 + H1 * H2 + H2 * OUT_PAD
                         + OUT_PAD * OUT_PAD)
    bytes_accessed = (
        B_pad * IN_FEATURES * 2                                     # x (bf16)
        + (w1_p.size + w2_p.size + w3_p.size + w4_p.size) * 2       # weights
        + (b1_p.size + b2_p.size + b3_p.size + b4_p.size) * 4       # biases
        + B_pad * OUT_PAD * 4                                       # output
    )

    out_padded = pl.pallas_call(
        mlp_kernel,
        out_shape=jax.ShapeDtypeStruct((B_pad, OUT_PAD), jnp.float32),
        grid=(n_tiles,),
        in_specs=[
            pl.BlockSpec((tile_b, IN_FEATURES), lambda i: (i, 0)),  # x streams
            pl.BlockSpec((IN_FEATURES, H1), const),
            pl.BlockSpec((1, H1), const),
            pl.BlockSpec((H1, H2), const),
            pl.BlockSpec((1, H2), const),
            pl.BlockSpec((H2, OUT_PAD), const),
            pl.BlockSpec((1, OUT_PAD), const),
            pl.BlockSpec((OUT_PAD, OUT_PAD), const),
            pl.BlockSpec((1, OUT_PAD), const),
        ],
        out_specs=pl.BlockSpec((tile_b, OUT_PAD), lambda i: (i, 0)),
        compiler_params=pltpu.CompilerParams(
            dimension_semantics=("parallel",)),
        cost_estimate=pl.CostEstimate(
            flops=flops,
            transcendentals=B_pad * (OUT_PAD + 1),
            bytes_accessed=bytes_accessed),
    )(x_bf16, w1_p, b1_p, w2_p, b2_p, w3_p, b3_p, w4_p, b4_p)

    # Drop batch padding and the 118 padded output lanes.
    return out_padded[:B, :NUM_CLASSES]


def init_params(key):
    """Deterministic init matching nn.Linear shapes, stored as (in, out)."""
    dims = [(IN_FEATURES, H1), (H1, H2), (H2, H3), (H3, NUM_CLASSES)]
    params = []
    for i, (fan_in, fan_out) in enumerate(dims):
        kw, kb = jax.random.split(jax.random.fold_in(key, i))
        bound = 1.0 / jnp.sqrt(fan_in)
        # (in, out) layout == transpose of PyTorch's (out, in) weight.
        w = jax.random.uniform(kw, (fan_in, fan_out), jnp.float32, -bound, bound)
        b = jax.random.uniform(kb, (1, fan_out), jnp.float32, -bound, bound)
        params.append((w, b))
    return params


def reference_forward(x, params):
    """Pure-JAX f32 reference (PyTorch semantics)."""
    (w1, b1), (w2, b2), (w3, b3), (w4, b4) = params
    h = jnp.maximum(x @ w1 + b1, 0.0)
    h = jnp.maximum(h @ w2 + b2, 0.0)
    h = jnp.maximum(h @ w3 + b3, 0.0)
    logits = h @ w4 + b4
    m = jnp.max(logits, axis=-1, keepdims=True)
    z = logits - m
    return z - jnp.log(jnp.sum(jnp.exp(z), axis=-1, keepdims=True))


if __name__ == "__main__":
    key = jax.random.PRNGKey(0)
    k_x, k_p = jax.random.split(key)

    batch = 8
    x = jax.random.normal(k_x, (batch, IN_FEATURES), dtype=jnp.float32)
    params = init_params(k_p)
    prepared = prepare_params(params)           # one-time weight prep

    fwd = jax.jit(net_forward)
    out = fwd(x, prepared)
    out = jax.block_until_ready(out)

    assert out.shape == (batch, NUM_CLASSES)
    # log-softmax rows should exponentiate-sum to ~1
    row_sums = jnp.sum(jnp.exp(out), axis=1)
    assert jnp.allclose(row_sums, 1.0, atol=1e-3), row_sums
    # bf16 inputs/weights in the kernel vs f32 reference: loose tolerance.
    ref = reference_forward(x, params)
    assert jnp.allclose(out, ref, atol=5e-2, rtol=5e-2), jnp.max(jnp.abs(out - ref))

    print("KERNEL_OK")
</pallas_src>

<mosaic_0001>
module attributes {stable_mosaic.version = 11 : i64} {
  func.func @mlp_kernel(%arg0: i32, %arg1: memref<16x784xbf16, #tpu.memory_space<vmem>>, %arg2: memref<784x256xbf16, #tpu.memory_space<vmem>>, %arg3: memref<1x256xf32, #tpu.memory_space<vmem>>, %arg4: memref<256x128xbf16, #tpu.memory_space<vmem>>, %arg5: memref<1x128xf32, #tpu.memory_space<vmem>>, %arg6: memref<128x128xbf16, #tpu.memory_space<vmem>>, %arg7: memref<1x128xf32, #tpu.memory_space<vmem>>, %arg8: memref<128x128xbf16, #tpu.memory_space<vmem>>, %arg9: memref<1x128xf32, #tpu.memory_space<vmem>>, %arg10: memref<16x128xf32, #tpu.memory_space<vmem>>) attributes {dimension_semantics = [#tpu.dimension_semantics<parallel>], iteration_bounds = array<i64: 1>, scalar_prefetch = 0 : i64, scratch_operands = 0 : i64, tpu.core_type = #tpu.core_type<tc>, window_params = [{transform_indices = @transform_0, window_bounds = array<i64: 16, 784>}, {pipeline_mode = #tpu.pipeline_mode<synchronous>, transform_indices = @transform_1, window_bounds = array<i64: 784, 256>}, {pipeline_mode = #tpu.pipeline_mode<synchronous>, transform_indices = @transform_2, window_bounds = array<i64: 1, 256>}, {pipeline_mode = #tpu.pipeline_mode<synchronous>, transform_indices = @transform_3, window_bounds = array<i64: 256, 128>}, {pipeline_mode = #tpu.pipeline_mode<synchronous>, transform_indices = @transform_4, window_bounds = array<i64: 1, 128>}, {pipeline_mode = #tpu.pipeline_mode<synchronous>, transform_indices = @transform_5, window_bounds = array<i64: 128, 128>}, {pipeline_mode = #tpu.pipeline_mode<synchronous>, transform_indices = @transform_6, window_bounds = array<i64: 1, 128>}, {pipeline_mode = #tpu.pipeline_mode<synchronous>, transform_indices = @transform_7, window_bounds = array<i64: 128, 128>}, {pipeline_mode = #tpu.pipeline_mode<synchronous>, transform_indices = @transform_8, window_bounds = array<i64: 1, 128>}, {transform_indices = @transform_9, window_bounds = array<i64: 16, 128>}]} {
    %c0 = arith.constant 0 : index
    %c0_0 = arith.constant 0 : index
    %0 = vector.load %arg1[%c0, %c0_0] : memref<16x784xbf16, #tpu.memory_space<vmem>>, vector<16x784xbf16>
    %c0_1 = arith.constant 0 : index
    %c0_2 = arith.constant 0 : index
    %1 = vector.load %arg2[%c0_1, %c0_2] : memref<784x256xbf16, #tpu.memory_space<vmem>>, vector<784x256xbf16>
    %cst = arith.constant dense<0.000000e+00> : vector<16x256xf32>
    %2 = tpu.matmul %0, %1, %cst {dimension_numbers = #tpu.dot_dimension_numbers<[1], [0], [0], [1], [0, 0, 1, 1], [], []>} : vector<16x784xbf16>, vector<784x256xbf16>, vector<16x256xf32> -> vector<16x256xf32>
    %c0_3 = arith.constant 0 : index
    %c0_4 = arith.constant 0 : index
    %3 = vector.load %arg3[%c0_3, %c0_4] : memref<1x256xf32, #tpu.memory_space<vmem>>, vector<1x256xf32>
    %4 = vector.broadcast %3 : vector<1x256xf32> to vector<16x256xf32>
    %5 = arith.addf %2, %4 : vector<16x256xf32>
    %cst_5 = arith.constant 0.000000e+00 : f32
    %6 = vector.broadcast %cst_5 : f32 to vector<16x256xf32>
    %7 = arith.maximumf %5, %6 : vector<16x256xf32>
    %8 = arith.truncf %7 : vector<16x256xf32> to vector<16x256xbf16>
    %c0_6 = arith.constant 0 : index
    %c0_7 = arith.constant 0 : index
    %9 = vector.load %arg4[%c0_6, %c0_7] : memref<256x128xbf16, #tpu.memory_space<vmem>>, vector<256x128xbf16>
    %cst_8 = arith.constant dense<0.000000e+00> : vector<16x128xf32>
    %10 = tpu.matmul %8, %9, %cst_8 {dimension_numbers = #tpu.dot_dimension_numbers<[1], [0], [0], [1], [0, 0, 1, 1], [], []>} : vector<16x256xbf16>, vector<256x128xbf16>, vector<16x128xf32> -> vector<16x128xf32>
    %c0_9 = arith.constant 0 : index
    %c0_10 = arith.constant 0 : index
    %11 = vector.load %arg5[%c0_9, %c0_10] : memref<1x128xf32, #tpu.memory_space<vmem>>, vector<1x128xf32>
    %12 = vector.broadcast %11 : vector<1x128xf32> to vector<16x128xf32>
    %13 = arith.addf %10, %12 : vector<16x128xf32>
    %cst_11 = arith.constant 0.000000e+00 : f32
    %14 = vector.broadcast %cst_11 : f32 to vector<16x128xf32>
    %15 = arith.maximumf %13, %14 : vector<16x128xf32>
    %16 = arith.truncf %15 : vector<16x128xf32> to vector<16x128xbf16>
    %c0_12 = arith.constant 0 : index
    %c0_13 = arith.constant 0 : index
    %17 = vector.load %arg6[%c0_12, %c0_13] : memref<128x128xbf16, #tpu.memory_space<vmem>>, vector<128x128xbf16>
    %cst_14 = arith.constant dense<0.000000e+00> : vector<16x128xf32>
    %18 = tpu.matmul %16, %17, %cst_14 {dimension_numbers = #tpu.dot_dimension_numbers<[1], [0], [0], [1], [0, 0, 1, 1], [], []>} : vector<16x128xbf16>, vector<128x128xbf16>, vector<16x128xf32> -> vector<16x128xf32>
    %c0_15 = arith.constant 0 : index
    %c0_16 = arith.constant 0 : index
    %19 = vector.load %arg7[%c0_15, %c0_16] : memref<1x128xf32, #tpu.memory_space<vmem>>, vector<1x128xf32>
    %20 = vector.broadcast %19 : vector<1x128xf32> to vector<16x128xf32>
    %21 = arith.addf %18, %20 : vector<16x128xf32>
    %cst_17 = arith.constant 0.000000e+00 : f32
    %22 = vector.broadcast %cst_17 : f32 to vector<16x128xf32>
    %23 = arith.maximumf %21, %22 : vector<16x128xf32>
    %24 = arith.truncf %23 : vector<16x128xf32> to vector<16x128xbf16>
    %c0_18 = arith.constant 0 : index
    %c0_19 = arith.constant 0 : index
    %25 = vector.load %arg8[%c0_18, %c0_19] : memref<128x128xbf16, #tpu.memory_space<vmem>>, vector<128x128xbf16>
    %cst_20 = arith.constant dense<0.000000e+00> : vector<16x128xf32>
    %26 = tpu.matmul %24, %25, %cst_20 {dimension_numbers = #tpu.dot_dimension_numbers<[1], [0], [0], [1], [0, 0, 1, 1], [], []>} : vector<16x128xbf16>, vector<128x128xbf16>, vector<16x128xf32> -> vector<16x128xf32>
    %c0_21 = arith.constant 0 : index
    %c0_22 = arith.constant 0 : index
    %27 = vector.load %arg9[%c0_21, %c0_22] : memref<1x128xf32, #tpu.memory_space<vmem>>, vector<1x128xf32>
    %28 = vector.broadcast %27 : vector<1x128xf32> to vector<16x128xf32>
    %29 = arith.addf %26, %28 : vector<16x128xf32>
    %30 = tpu.iota {dimensions = array<i32: 1>} : vector<16x128xi32>
    %c10_i32 = arith.constant 10 : i32
    %31 = vector.broadcast %c10_i32 : i32 to vector<16x128xi32>
    %32 = arith.cmpi slt, %30, %31 : vector<16x128xi32>
    %cst_23 = arith.constant 0xFF800000 : f32
    %33 = vector.broadcast %cst_23 : f32 to vector<16x128xf32>
    %34 = arith.select %32, %29, %33 : vector<16x128xi1>, vector<16x128xf32>
    %cst_24 = arith.constant dense<0xFF800000> : vector<16xf32>
    %35 = vector.multi_reduction <maximumf>, %34, %cst_24 [1] : vector<16x128xf32> to vector<16xf32>
    %36 = vector.shape_cast %35 : vector<16xf32> to vector<16x1xf32>
    %37 = vector.broadcast %36 : vector<16x1xf32> to vector<16x128xf32>
    %38 = arith.subf %34, %37 : vector<16x128xf32>
    %39 = math.exp %38 : vector<16x128xf32>
    %cst_25 = arith.constant dense<0.000000e+00> : vector<16xf32>
    %40 = vector.multi_reduction <add>, %39, %cst_25 [1] : vector<16x128xf32> to vector<16xf32>
    %41 = vector.shape_cast %40 : vector<16xf32> to vector<16x1xf32>
    %42 = math.log %41 : vector<16x1xf32>
    %43 = vector.broadcast %42 : vector<16x1xf32> to vector<16x128xf32>
    %44 = arith.subf %38, %43 : vector<16x128xf32>
    %cst_26 = arith.constant 0.000000e+00 : f32
    %45 = vector.broadcast %cst_26 : f32 to vector<16x128xf32>
    %46 = arith.select %32, %44, %45 : vector<16x128xi1>, vector<16x128xf32>
    %c0_27 = arith.constant 0 : index
    %c0_28 = arith.constant 0 : index
    %47 = vector.load %arg10[%c0_27, %c0_28] : memref<16x128xf32, #tpu.memory_space<vmem>>, vector<16x128xf32>
    tpu.vector_store %arg10[%c0_27, %c0_28], %46 {strides = array<i32>} : memref<16x128xf32, #tpu.memory_space<vmem>>, vector<16x128xf32>,
    return
  }
  func.func @transform_0(%arg0: i32) -> (i32, i32) {
    %c0_i32 = arith.constant 0 : i32
    %c0_i32_0 = arith.constant 0 : i32
    return %arg0, %c0_i32 : i32, i32
  }
  func.func @transform_1(%arg0: i32) -> (i32, i32) {
    %c0_i32 = arith.constant 0 : i32
    %c0_i32_0 = arith.constant 0 : i32
    %c0_i32_1 = arith.constant 0 : i32
    return %c0_i32, %c0_i32_0 : i32, i32
  }
  func.func @transform_2(%arg0: i32) -> (i32, i32) {
    %c0_i32 = arith.constant 0 : i32
    %c0_i32_0 = arith.constant 0 : i32
    %c0_i32_1 = arith.constant 0 : i32
    return %c0_i32, %c0_i32_0 : i32, i32
  }
  func.func @transform_3(%arg0: i32) -> (i32, i32) {
    %c0_i32 = arith.constant 0 : i32
    %c0_i32_0 = arith.constant 0 : i32
    %c0_i32_1 = arith.constant 0 : i32
    return %c0_i32, %c0_i32_0 : i32, i32
  }
  func.func @transform_4(%arg0: i32) -> (i32, i32) {
    %c0_i32 = arith.constant 0 : i32
    %c0_i32_0 = arith.constant 0 : i32
    %c0_i32_1 = arith.constant 0 : i32
    return %c0_i32, %c0_i32_0 : i32, i32
  }
  func.func @transform_5(%arg0: i32) -> (i32, i32) {
    %c0_i32 = arith.constant 0 : i32
    %c0_i32_0 = arith.constant 0 : i32
    %c0_i32_1 = arith.constant 0 : i32
    return %c0_i32, %c0_i32_0 : i32, i32
  }
  func.func @transform_6(%arg0: i32) -> (i32, i32) {
    %c0_i32 = arith.constant 0 : i32
    %c0_i32_0 = arith.constant 0 : i32
    %c0_i32_1 = arith.constant 0 : i32
    return %c0_i32, %c0_i32_0 : i32, i32
  }
  func.func @transform_7(%arg0: i32) -> (i32, i32) {
    %c0_i32 = arith.constant 0 : i32
    %c0_i32_0 = arith.constant 0 : i32
    %c0_i32_1 = arith.constant 0 : i32
    return %c0_i32, %c0_i32_0 : i32, i32
  }
  func.func @transform_8(%arg0: i32) -> (i32, i32) {
    %c0_i32 = arith.constant 0 : i32
    %c0_i32_0 = arith.constant 0 : i32
    %c0_i32_1 = arith.constant 0 : i32
    return %c0_i32, %c0_i32_0 : i32, i32
  }
  func.func @transform_9(%arg0: i32) -> (i32, i32) {
    %c0_i32 = arith.constant 0 : i32
    %c0_i32_0 = arith.constant 0 : i32
    return %arg0, %c0_i32 : i32, i32
  }
}

</mosaic_0001>

<llo_original>
// kernel: net_forward.1
$region0: #{net_forward.1}
  #allocation0 [shape = 'u32[]', space=smem, size = 0x4, offset = 0x4, fixed_abs, tag = 'smem constant byte address 0x4 - core index']
  #allocation1 [shape = 'u32[144,128]{1,0:T(1,128)}', space=vmem, size = 0x12000, scoped, tag = 'internal scratch']
  %s0 = inlined_call_operand.vmem [shape: bf16[16,784], index: 0, kind: input, shape index: {}]
  %s1 = inlined_call_operand.hbm [shape: bf16[784,256], index: 1, kind: input, shape index: {}]
  %s2 = inlined_call_operand.vmem [shape: f32[1,256], index: 2, kind: input, shape index: {}]
  %s3 = inlined_call_operand.vmem [shape: bf16[256,128], index: 3, kind: input, shape index: {}]
  %s4 = inlined_call_operand.vmem [shape: f32[1,128], index: 4, kind: input, shape index: {}]
  %s5 = inlined_call_operand.hbm [shape: bf16[128,128], index: 5, kind: input, shape index: {}]
  %s6 = inlined_call_operand.hbm [shape: f32[1,128], index: 6, kind: input, shape index: {}]
  %s7 = inlined_call_operand.vmem [shape: bf16[128,128], index: 7, kind: input, shape index: {}]
  %s8 = inlined_call_operand.vmem [shape: f32[1,128], index: 8, kind: input, shape index: {}]
  %s9 = inlined_call_operand.vmem [shape: f32[16,128], index: 9, kind: output, shape index: {}]
  %s10 = sld [smem:[#allocation0]]
  $region58: #{net_forward.1} parent=0
    _
  %s12 = ssub.s32 1, %s10
  %s13 = scalar_select 0, %s12, %s10
  $region1: #{net_forward.1} parent=0
    #allocation2 [shape = 'u8[401408]{0}', space=vmem, size = 0x62000, scoped, tag = 'input window, operand 1, single buffered']
    #allocation3 [shape = 's32[1]{0}', space=sflag, size = 0x4, scoped, tag = 'scoped memory for net_forward.1']
    #allocation4 [shape = 'u8[32768]{0}', space=vmem, size = 0x8000, scoped, tag = 'input window, operand 5, single buffered']
    #allocation5 [shape = 's32[1]{0}', space=sflag, size = 0x4, scoped, tag = 'scoped memory for net_forward.1']
    #allocation6 [shape = 'u8[512]{0}', space=vmem, size = 0x400, scoped, tag = 'input window, operand 6, single buffered']
    %14 = vsyncpa [#allocation3], 0
    %15 = vsyncpa [#allocation5], 0
    // Predicated region
    $region2: #{net_forward.1} parent=1 // pred_check
      _
    $region3: #{net_forward.1} parent=1 // pred_check_branch
      %17 = sbr.rel (0) target = $region5
    $region4: #{net_forward.1} parent=1 // pred_region
      _
    $region5: #{net_forward.1} parent=1 // pred_fallthru
      _
    // Predicated region
    $region6: #{net_forward.1} parent=1 // pred_check
      _
    $region7: #{net_forward.1} parent=1 // pred_check_branch
      %19 = sbr.rel (0) target = $region9
    $region8: #{net_forward.1} parent=1 // pred_region
      %s21 = ssub.s32 12544, 12544
      %22 = vsyncadd [#allocation3], %s21
      %s23 = sshll.u32 [#allocation2], 4
      %s24 = int_to_ptr.vmem [resolvable:$true] %s23
      %29 = dma.hbm_to_vmem [thread:$0]  %s1, 12544, %s24, [#allocation3], 128, 128, 8
    $region9: #{net_forward.1} parent=1 // pred_fallthru
      _
    // Predicated region
    $region10: #{net_forward.1} parent=1 // pred_check
      _
    $region11: #{net_forward.1} parent=1 // pred_check_branch
      %31 = sbr.rel (0) target = $region13
    $region12: #{net_forward.1} parent=1 // pred_region
      _
    $region13: #{net_forward.1} parent=1 // pred_fallthru
      _
    // Predicated region
    $region14: #{net_forward.1} parent=1 // pred_check
      _
    $region15: #{net_forward.1} parent=1 // pred_check_branch
      %33 = sbr.rel (0) target = $region17
    $region16: #{net_forward.1} parent=1 // pred_region
      _
    $region17: #{net_forward.1} parent=1 // pred_fallthru
      _
    // Predicated region
    $region18: #{net_forward.1} parent=1 // pred_check
      _
    $region19: #{net_forward.1} parent=1 // pred_check_branch
      %35 = sbr.rel (0) target = $region21
    $region20: #{net_forward.1} parent=1 // pred_region
      _
    $region21: #{net_forward.1} parent=1 // pred_fallthru
      _
    // Predicated region
    $region22: #{net_forward.1} parent=1 // pred_check
      _
    $region23: #{net_forward.1} parent=1 // pred_check_branch
      %37 = sbr.rel (0) target = $region25
    $region24: #{net_forward.1} parent=1 // pred_region
      %s39 = ssub.s32 1024, 1024
      %40 = vsyncadd [#allocation5], %s39
      %s41 = sshll.u32 [#allocation4], 4
      %s42 = int_to_ptr.vmem [resolvable:$true] %s41
      %47 = dma.hbm_to_vmem [thread:$0]  %s5, 1024, %s42, [#allocation5], 64, 64, 4
    $region25: #{net_forward.1} parent=1 // pred_fallthru
      _
    // Predicated region
    $region26: #{net_forward.1} parent=1 // pred_check
      _
    $region27: #{net_forward.1} parent=1 // pred_check_branch
      %49 = sbr.rel (0) target = $region29
    $region28: #{net_forward.1} parent=1 // pred_region
      %s51 = ssub.s32 16, 16
      %52 = vsyncadd [#allocation5], %s51
      %s54 = sshll.u32 [#allocation6], 4
      %s55 = int_to_ptr.vmem [resolvable:$true] %s54
      %57 = dma.hbm_to_vmem [thread:$0]  %s6, 16, %s55, [#allocation5]
    $region29: #{net_forward.1} parent=1 // pred_fallthru
      _
    // Predicated region
    $region30: #{net_forward.1} parent=1 // pred_check
      _
    $region31: #{net_forward.1} parent=1 // pred_check_branch
      %59 = sbr.rel (0) target = $region33
    $region32: #{net_forward.1} parent=1 // pred_region
      _
    $region33: #{net_forward.1} parent=1 // pred_fallthru
      _
    // Predicated region
    $region34: #{net_forward.1} parent=1 // pred_check
      _
    $region35: #{net_forward.1} parent=1 // pred_check_branch
      %61 = sbr.rel (0) target = $region37
    $region36: #{net_forward.1} parent=1 // pred_region
      _
    $region37: #{net_forward.1} parent=1 // pred_fallthru
      _
    // Predicated region
    $region38: #{net_forward.1} parent=1 // pred_check
      _
    $region39: #{net_forward.1} parent=1 // pred_check_branch
      %63 = sbr.rel (0) target = $region41
    $region40: #{net_forward.1} parent=1 // pred_region
      %64 = dma.done [#allocation3], 12544
    $region41: #{net_forward.1} parent=1 // pred_fallthru
      _
    // Predicated region
    $region42: #{net_forward.1} parent=1 // pred_check
      _
    $region43: #{net_forward.1} parent=1 // pred_check_branch
      %66 = sbr.rel (0) target = $region45
    $region44: #{net_forward.1} parent=1 // pred_region
      %67 = dma.done [#allocation5], 1024
    $region45: #{net_forward.1} parent=1 // pred_fallthru
      _
    // Predicated region
    $region46: #{net_forward.1} parent=1 // pred_check
      _
    $region47: #{net_forward.1} parent=1 // pred_check_branch
      %69 = sbr.rel (0) target = $region49
    $region48: #{net_forward.1} parent=1 // pred_region
      %70 = dma.done [#allocation5], 16
    $region49: #{net_forward.1} parent=1 // pred_fallthru
      _
    %v72 = vld [vmem:[%s0] sm:$0xff]
    %v73 = vld [vmem:[%s0 + $0x8] sm:$0xff]
    %v74 = vld [vmem:[%s0 + $0x10] sm:$0xff]
    %v75 = vld [vmem:[%s0 + $0x18] sm:$0xf]
    %v76 = vld [vmem:[%s0 + $0x1c] sm:$0xff]
    %v77 = vld [vmem:[%s0 + $0x24] sm:$0xff]
    %v78 = vld [vmem:[%s0 + $0x2c] sm:$0xff]
    %v79 = vld [vmem:[%s0 + $0x34] sm:$0xf]
    %v80 = vld [vmem:[#allocation2] sm:$0xff]
    %v81 = vld [vmem:[#allocation2 + $0x8] sm:$0xff]
    %v82 = vld [vmem:[#allocation2 + $0x10] sm:$0xff]
    %v83 = vld [vmem:[#allocation2 + $0x18] sm:$0xff]
    %v84 = vld [vmem:[#allocation2 + $0x20] sm:$0xff]
    %v85 = vld [vmem:[#allocation2 + $0x28] sm:$0xff]
    %v86 = vld [vmem:[#allocation2 + $0x30] sm:$0xff]
    %v87 = vld [vmem:[#allocation2 + $0x38] sm:$0xff]
    %v88 = vld [vmem:[#allocation2 + $0x40] sm:$0xff]
    %v89 = vld [vmem:[#allocation2 + $0x48] sm:$0xff]
    %v90 = vld [vmem:[#allocation2 + $0x50] sm:$0xff]
    %v91 = vld [vmem:[#allocation2 + $0x58] sm:$0xff]
    %v92 = vld [vmem:[#allocation2 + $0x60] sm:$0xff]
    %v93 = vld [vmem:[#allocation2 + $0x68] sm:$0xff]
    %v94 = vld [vmem:[#allocation2 + $0x70] sm:$0xff]
    %v95 = vld [vmem:[#allocation2 + $0x78] sm:$0xff]
    %v96 = vld [vmem:[#allocation2 + $0x80] sm:$0xff]
    %v97 = vld [vmem:[#allocation2 + $0x88] sm:$0xff]
    %v98 = vld [vmem:[#allocation2 + $0x90] sm:$0xff]
    %v99 = vld [vmem:[#allocation2 + $0x98] sm:$0xff]
    %v100 = vld [vmem:[#allocation2 + $0xa0] sm:$0xff]
    %v101 = vld [vmem:[#allocation2 + $0xa8] sm:$0xff]
    %v102 = vld [vmem:[#allocation2 + $0xb0] sm:$0xff]
    %v103 = vld [vmem:[#allocation2 + $0xb8] sm:$0xff]
    %v104 = vld [vmem:[#allocation2 + $0xc0] sm:$0xff]
    %v105 = vld [vmem:[#allocation2 + $0xc8] sm:$0xff]
    %v106 = vld [vmem:[#allocation2 + $0xd0] sm:$0xff]
    %v107 = vld [vmem:[#allocation2 + $0xd8] sm:$0xff]
    %v108 = vld [vmem:[#allocation2 + $0xe0] sm:$0xff]
    %v109 = vld [vmem:[#allocation2 + $0xe8] sm:$0xff]
    %v110 = vld [vmem:[#allocation2 + $0xf0] sm:$0xff]
    %v111 = vld [vmem:[#allocation2 + $0xf8] sm:$0xff]
    %v112 = vld [vmem:[#allocation2 + $0x100] sm:$0xff]
    %v113 = vld [vmem:[#allocation2 + $0x108] sm:$0xff]
    %v114 = vld [vmem:[#allocation2 + $0x110] sm:$0xff]
    %v115 = vld [vmem:[#allocation2 + $0x118] sm:$0xff]
    %v116 = vld [vmem:[#allocation2 + $0x120] sm:$0xff]
    %v117 = vld [vmem:[#allocation2 + $0x128] sm:$0xff]
    %v118 = vld [vmem:[#allocation2 + $0x130] sm:$0xff]
    %v119 = vld [vmem:[#allocation2 + $0x138] sm:$0xff]
    %v120 = vld [vmem:[#allocation2 + $0x140] sm:$0xff]
    %v121 = vld [vmem:[#allocation2 + $0x148] sm:$0xff]
    %v122 = vld [vmem:[#allocation2 + $0x150] sm:$0xff]
    %v123 = vld [vmem:[#allocation2 + $0x158] sm:$0xff]
    %v124 = vld [vmem:[#allocation2 + $0x160] sm:$0xff]
    %v125 = vld [vmem:[#allocation2 + $0x168] sm:$0xff]
    %v126 = vld [vmem:[#allocation2 + $0x170] sm:$0xff]
    %v127 = vld [vmem:[#allocation2 + $0x178] sm:$0xff]
    %v128 = vld [vmem:[#allocation2 + $0x180] sm:$0xff]
    %v129 = vld [vmem:[#allocation2 + $0x188] sm:$0xff]
    %v130 = vld [vmem:[#allocation2 + $0x190] sm:$0xff]
    %v131 = vld [vmem:[#allocation2 + $0x198] sm:$0xff]
    %v132 = vld [vmem:[#allocation2 + $0x1a0] sm:$0xff]
    %v133 = vld [vmem:[#allocation2 + $0x1a8] sm:$0xff]
    %v134 = vld [vmem:[#allocation2 + $0x1b0] sm:$0xff]
    %v135 = vld [vmem:[#allocation2 + $0x1b8] sm:$0xff]
    %v136 = vld [vmem:[#allocation2 + $0x1c0] sm:$0xff]
    %v137 = vld [vmem:[#allocation2 + $0x1c8] sm:$0xff]
    %v138 = vld [vmem:[#allocation2 + $0x1d0] sm:$0xff]
    %v139 = vld [vmem:[#allocation2 + $0x1d8] sm:$0xff]
    %v140 = vld [vmem:[#allocation2 + $0x1e0] sm:$0xff]
    %v141 = vld [vmem:[#allocation2 + $0x1e8] sm:$0xff]
    %v142 = vld [vmem:[#allocation2 + $0x1f0] sm:$0xff]
    %v143 = vld [vmem:[#allocation2 + $0x1f8] sm:$0xff]
    %v144 = vld [vmem:[#allocation2 + $0x200] sm:$0xff]
    %v145 = vld [vmem:[#allocation2 + $0x208] sm:$0xff]
    %v146 = vld [vmem:[#allocation2 + $0x210] sm:$0xff]
    %v147 = vld [vmem:[#allocation2 + $0x218] sm:$0xff]
    %v148 = vld [vmem:[#allocation2 + $0x220] sm:$0xff]
    %v149 = vld [vmem:[#allocation2 + $0x228] sm:$0xff]
    %v150 = vld [vmem:[#allocation2 + $0x230] sm:$0xff]
    %v151 = vld [vmem:[#allocation2 + $0x238] sm:$0xff]
    %v152 = vld [vmem:[#allocation2 + $0x240] sm:$0xff]
    %v153 = vld [vmem:[#allocation2 + $0x248] sm:$0xff]
    %v154 = vld [vmem:[#allocation2 + $0x250] sm:$0xff]
    %v155 = vld [vmem:[#allocation2 + $0x258] sm:$0xff]
    %v156 = vld [vmem:[#allocation2 + $0x260] sm:$0xff]
    %v157 = vld [vmem:[#allocation2 + $0x268] sm:$0xff]
    %v158 = vld [vmem:[#allocation2 + $0x270] sm:$0xff]
    %v159 = vld [vmem:[#allocation2 + $0x278] sm:$0xff]
    %v160 = vld [vmem:[#allocation2 + $0x280] sm:$0xff]
    %v161 = vld [vmem:[#allocation2 + $0x288] sm:$0xff]
    %v162 = vld [vmem:[#allocation2 + $0x290] sm:$0xff]
    %v163 = vld [vmem:[#allocation2 + $0x298] sm:$0xff]
    %v164 = vld [vmem:[#allocation2 + $0x2a0] sm:$0xff]
    %v165 = vld [vmem:[#allocation2 + $0x2a8] sm:$0xff]
    %v166 = vld [vmem:[#allocation2 + $0x2b0] sm:$0xff]
    %v167 = vld [vmem:[#allocation2 + $0x2b8] sm:$0xff]
    %v168 = vld [vmem:[#allocation2 + $0x2c0] sm:$0xff]
    %v169 = vld [vmem:[#allocation2 + $0x2c8] sm:$0xff]
    %v170 = vld [vmem:[#allocation2 + $0x2d0] sm:$0xff]
    %v171 = vld [vmem:[#allocation2 + $0x2d8] sm:$0xff]
    %v172 = vld [vmem:[#allocation2 + $0x2e0] sm:$0xff]
    %v173 = vld [vmem:[#allocation2 + $0x2e8] sm:$0xff]
    %v174 = vld [vmem:[#allocation2 + $0x2f0] sm:$0xff]
    %v175 = vld [vmem:[#allocation2 + $0x2f8] sm:$0xff]
    %v176 = vld [vmem:[#allocation2 + $0x300] sm:$0xff]
    %v177 = vld [vmem:[#allocation2 + $0x308] sm:$0xff]
    %v178 = vld [vmem:[%s2] sm:$0x3]
    %v180 = vlaneseq
    %v181 = vshrl.u32 %v180, 7
    %v182 = vsub.s32 0, %v181
    %v183 = vrot.slane %v178, %v182
    %v184 = vlaneseq
    %v185 = vshrl.u32 %v184, 7
    %v186 = vsub.s32 1, %v185
    %v187 = vrot.slane %v178, %v186
    %v198 = vunpack.c.l.b16 %v72
    %v199 = vunpack.c.h.b16 %v72
    %v200 = vunpack.c.l.b16 %v73
    %v201 = vunpack.c.h.b16 %v73
    %v202 = vunpack.c.l.b16 %v74
    %v203 = vunpack.c.h.b16 %v74
    %v204 = vunpack.c.l.b16 %v75
    %v205 = vunpack.c.l.b16 %v76
    %v206 = vunpack.c.h.b16 %v76
    %v207 = vunpack.c.l.b16 %v77
    %v208 = vunpack.c.h.b16 %v77
    %v209 = vunpack.c.l.b16 %v78
    %v210 = vunpack.c.h.b16 %v78
    %v211 = vunpack.c.l.b16 %v79
    %v212 = vpack.c.b16 %v205, %v198
    %v213 = vpack.c.b16 %v206, %v199
    %v214 = vpack.c.b16 %v207, %v200
    %v215 = vpack.c.b16 %v208, %v201
    %v216 = vpack.c.b16 %v209, %v202
    %v217 = vpack.c.b16 %v210, %v203
    %v218 = vpack.c.b16 %v211, %v204
    %v323 = vunpack.c.l.b16 %v80
    %v324 = vunpack.c.h.b16 %v80
    %v325 = vunpack.c.l.b16 %v81
    %v326 = vunpack.c.h.b16 %v81
    %v327 = vunpack.c.l.b16 %v82
    %v328 = vunpack.c.h.b16 %v82
    %v329 = vunpack.c.l.b16 %v83
    %v330 = vunpack.c.h.b16 %v83
    %v331 = vunpack.c.l.b16 %v84
    %v332 = vunpack.c.h.b16 %v84
    %v333 = vunpack.c.l.b16 %v85
    %v334 = vunpack.c.h.b16 %v85
    %v335 = vunpack.c.l.b16 %v86
    %v336 = vunpack.c.h.b16 %v86
    %v337 = vunpack.c.l.b16 %v87
    %v338 = vunpack.c.h.b16 %v87
    %v339 = vunpack.c.l.b16 %v88
    %v340 = vunpack.c.h.b16 %v88
    %v341 = vunpack.c.l.b16 %v89
    %v342 = vunpack.c.h.b16 %v89
    %v343 = vunpack.c.l.b16 %v90
    %v344 = vunpack.c.h.b16 %v90
    %v345 = vunpack.c.l.b16 %v91
    %v346 = vunpack.c.h.b16 %v91
    %v347 = vunpack.c.l.b16 %v92
    %v348 = vunpack.c.h.b16 %v92
    %v349 = vunpack.c.l.b16 %v93
    %v350 = vunpack.c.h.b16 %v93
    %v351 = vunpack.c.l.b16 %v94
    %v352 = vunpack.c.h.b16 %v94
    %v353 = vunpack.c.l.b16 %v95
    %v354 = vunpack.c.h.b16 %v95
    %v355 = vunpack.c.l.b16 %v96
    %v356 = vunpack.c.h.b16 %v96
    %v357 = vunpack.c.l.b16 %v97
    %v358 = vunpack.c.h.b16 %v97
    %v359 = vunpack.c.l.b16 %v98
    %v360 = vunpack.c.h.b16 %v98
    %v361 = vunpack.c.l.b16 %v99
    %v362 = vunpack.c.h.b16 %v99
    %v363 = vunpack.c.l.b16 %v100
    %v364 = vunpack.c.h.b16 %v100
    %v365 = vunpack.c.l.b16 %v101
    %v366 = vunpack.c.h.b16 %v101
    %v367 = vunpack.c.l.b16 %v102
    %v368 = vunpack.c.h.b16 %v102
    %v369 = vunpack.c.l.b16 %v103
    %v370 = vunpack.c.h.b16 %v103
    %v371 = vunpack.c.l.b16 %v104
    %v372 = vunpack.c.h.b16 %v104
    %v373 = vunpack.c.l.b16 %v105
    %v374 = vunpack.c.h.b16 %v105
    %v375 = vunpack.c.l.b16 %v106
    %v376 = vunpack.c.h.b16 %v106
    %v377 = vunpack.c.l.b16 %v107
    %v378 = vunpack.c.h.b16 %v107
    %v379 = vunpack.c.l.b16 %v108
    %v380 = vunpack.c.h.b16 %v108
    %v381 = vunpack.c.l.b16 %v109
    %v382 = vunpack.c.h.b16 %v109
    %v383 = vunpack.c.l.b16 %v110
    %v384 = vunpack.c.h.b16 %v110
    %v385 = vunpack.c.l.b16 %v111
    %v386 = vunpack.c.h.b16 %v111
    %v387 = vunpack.c.l.b16 %v112
    %v388 = vunpack.c.h.b16 %v112
    %v389 = vunpack.c.l.b16 %v113
    %v390 = vunpack.c.h.b16 %v113
    %v391 = vunpack.c.l.b16 %v114
    %v392 = vunpack.c.h.b16 %v114
    %v393 = vunpack.c.l.b16 %v115
    %v394 = vunpack.c.h.b16 %v115
    %v395 = vunpack.c.l.b16 %v116
    %v396 = vunpack.c.h.b16 %v116
    %v397 = vunpack.c.l.b16 %v117
    %v398 = vunpack.c.h.b16 %v117
    %v399 = vunpack.c.l.b16 %v118
    %v400 = vunpack.c.h.b16 %v118
    %v401 = vunpack.c.l.b16 %v119
    %v402 = vunpack.c.h.b16 %v119
    %v403 = vunpack.c.l.b16 %v120
    %v404 = vunpack.c.h.b16 %v120
    %v405 = vunpack.c.l.b16 %v121
    %v406 = vunpack.c.h.b16 %v121
    %v407 = vunpack.c.l.b16 %v122
    %v408 = vunpack.c.h.b16 %v122
    %v409 = vunpack.c.l.b16 %v123
    %v410 = vunpack.c.h.b16 %v123
    %v411 = vunpack.c.l.b16 %v124
    %v412 = vunpack.c.h.b16 %v124
    %v413 = vunpack.c.l.b16 %v125
    %v414 = vunpack.c.h.b16 %v125
    %v415 = vunpack.c.l.b16 %v126
    %v416 = vunpack.c.h.b16 %v126
    %v417 = vunpack.c.l.b16 %v127
    %v418 = vunpack.c.h.b16 %v127
    %v419 = vunpack.c.l.b16 %v128
    %v420 = vunpack.c.h.b16 %v128
    %v421 = vunpack.c.l.b16 %v129
    %v422 = vunpack.c.h.b16 %v129
    %v423 = vunpack.c.l.b16 %v130
    %v424 = vunpack.c.h.b16 %v130
    %v425 = vunpack.c.l.b16 %v131
    %v426 = vunpack.c.h.b16 %v131
    %v427 = vunpack.c.l.b16 %v132
    %v428 = vunpack.c.h.b16 %v132
    %v429 = vunpack.c.l.b16 %v133
    %v430 = vunpack.c.h.b16 %v133
    %v431 = vunpack.c.l.b16 %v134
    %v432 = vunpack.c.h.b16 %v134
    %v433 = vunpack.c.l.b16 %v135
    %v434 = vunpack.c.h.b16 %v135
    %v435 = vunpack.c.l.b16 %v136
    %v436 = vunpack.c.h.b16 %v136
    %v437 = vunpack.c.l.b16 %v137
    %v438 = vunpack.c.h.b16 %v137
    %v439 = vunpack.c.l.b16 %v138
    %v440 = vunpack.c.h.b16 %v138
    %v441 = vunpack.c.l.b16 %v139
    %v442 = vunpack.c.h.b16 %v139
    %v443 = vunpack.c.l.b16 %v140
    %v444 = vunpack.c.h.b16 %v140
    %v445 = vunpack.c.l.b16 %v141
    %v446 = vunpack.c.h.b16 %v141
    %v447 = vunpack.c.l.b16 %v142
    %v448 = vunpack.c.h.b16 %v142
    %v449 = vunpack.c.l.b16 %v143
    %v450 = vunpack.c.h.b16 %v143
    %v451 = vunpack.c.l.b16 %v144
    %v452 = vunpack.c.h.b16 %v144
    %v453 = vunpack.c.l.b16 %v145
    %v454 = vunpack.c.h.b16 %v145
    %v455 = vunpack.c.l.b16 %v146
    %v456 = vunpack.c.h.b16 %v146
    %v457 = vunpack.c.l.b16 %v147
    %v458 = vunpack.c.h.b16 %v147
    %v459 = vunpack.c.l.b16 %v148
    %v460 = vunpack.c.h.b16 %v148
    %v461 = vunpack.c.l.b16 %v149
    %v462 = vunpack.c.h.b16 %v149
    %v463 = vunpack.c.l.b16 %v150
    %v464 = vunpack.c.h.b16 %v150
    %v465 = vunpack.c.l.b16 %v151
    %v466 = vunpack.c.h.b16 %v151
    %v467 = vunpack.c.l.b16 %v152
    %v468 = vunpack.c.h.b16 %v152
    %v469 = vunpack.c.l.b16 %v153
    %v470 = vunpack.c.h.b16 %v153
    %v471 = vunpack.c.l.b16 %v154
    %v472 = vunpack.c.h.b16 %v154
    %v473 = vunpack.c.l.b16 %v155
    %v474 = vunpack.c.h.b16 %v155
    %v475 = vunpack.c.l.b16 %v156
    %v476 = vunpack.c.h.b16 %v156
    %v477 = vunpack.c.l.b16 %v157
    %v478 = vunpack.c.h.b16 %v157
    %v479 = vunpack.c.l.b16 %v158
    %v480 = vunpack.c.h.b16 %v158
    %v481 = vunpack.c.l.b16 %v159
    %v482 = vunpack.c.h.b16 %v159
    %v483 = vunpack.c.l.b16 %v160
    %v484 = vunpack.c.h.b16 %v160
    %v485 = vunpack.c.l.b16 %v161
    %v486 = vunpack.c.h.b16 %v161
    %v487 = vunpack.c.l.b16 %v162
    %v488 = vunpack.c.h.b16 %v162
    %v489 = vunpack.c.l.b16 %v163
    %v490 = vunpack.c.h.b16 %v163
    %v491 = vunpack.c.l.b16 %v164
    %v492 = vunpack.c.h.b16 %v164
    %v493 = vunpack.c.l.b16 %v165
    %v494 = vunpack.c.h.b16 %v165
    %v495 = vunpack.c.l.b16 %v166
    %v496 = vunpack.c.h.b16 %v166
    %v497 = vunpack.c.l.b16 %v167
    %v498 = vunpack.c.h.b16 %v167
    %v499 = vunpack.c.l.b16 %v168
    %v500 = vunpack.c.h.b16 %v168
    %v501 = vunpack.c.l.b16 %v169
    %v502 = vunpack.c.h.b16 %v169
    %v503 = vunpack.c.l.b16 %v170
    %v504 = vunpack.c.h.b16 %v170
    %v505 = vunpack.c.l.b16 %v171
    %v506 = vunpack.c.h.b16 %v171
    %v507 = vunpack.c.l.b16 %v172
    %v508 = vunpack.c.h.b16 %v172
    %v509 = vunpack.c.l.b16 %v173
    %v510 = vunpack.c.h.b16 %v173
    %v511 = vunpack.c.l.b16 %v174
    %v512 = vunpack.c.h.b16 %v174
    %v513 = vunpack.c.l.b16 %v175
    %v514 = vunpack.c.h.b16 %v175
    %v515 = vunpack.c.l.b16 %v176
    %v516 = vunpack.c.h.b16 %v176
    %v517 = vunpack.c.l.b16 %v177
    %v518 = vunpack.c.h.b16 %v177
    %v519 = vpack.c.b16 %v325, %v323
    %v520 = vpack.c.b16 %v326, %v324
    %v521 = vpack.c.b16 %v329, %v327
    %v522 = vpack.c.b16 %v330, %v328
    %v523 = vpack.c.b16 %v333, %v331
    %v524 = vpack.c.b16 %v334, %v332
    %v525 = vpack.c.b16 %v337, %v335
    %v526 = vpack.c.b16 %v338, %v336
    %v527 = vpack.c.b16 %v341, %v339
    %v528 = vpack.c.b16 %v342, %v340
    %v529 = vpack.c.b16 %v345, %v343
    %v530 = vpack.c.b16 %v346, %v344
    %v531 = vpack.c.b16 %v349, %v347
    %v532 = vpack.c.b16 %v350, %v348
    %v533 = vpack.c.b16 %v353, %v351
    %v534 = vpack.c.b16 %v354, %v352
    %v535 = vpack.c.b16 %v357, %v355
    %v536 = vpack.c.b16 %v358, %v356
    %v537 = vpack.c.b16 %v361, %v359
    %v538 = vpack.c.b16 %v362, %v360
    %v539 = vpack.c.b16 %v365, %v363
    %v540 = vpack.c.b16 %v366, %v364
    %v541 = vpack.c.b16 %v369, %v367
    %v542 = vpack.c.b16 %v370, %v368
    %v543 = vpack.c.b16 %v373, %v371
    %v544 = vpack.c.b16 %v374, %v372
    %v545 = vpack.c.b16 %v377, %v375
    %v546 = vpack.c.b16 %v378, %v376
    %v547 = vpack.c.b16 %v381, %v379
    %v548 = vpack.c.b16 %v382, %v380
    %v549 = vpack.c.b16 %v385, %v383
    %v550 = vpack.c.b16 %v386, %v384
    %v551 = vpack.c.b16 %v389, %v387
    %v552 = vpack.c.b16 %v390, %v388
    %v553 = vpack.c.b16 %v393, %v391
    %v554 = vpack.c.b16 %v394, %v392
    %v555 = vpack.c.b16 %v397, %v395
    %v556 = vpack.c.b16 %v398, %v396
    %v557 = vpack.c.b16 %v401, %v399
    %v558 = vpack.c.b16 %v402, %v400
    %v559 = vpack.c.b16 %v405, %v403
    %v560 = vpack.c.b16 %v406, %v404
    %v561 = vpack.c.b16 %v409, %v407
    %v562 = vpack.c.b16 %v410, %v408
    %v563 = vpack.c.b16 %v413, %v411
    %v564 = vpack.c.b16 %v414, %v412
    %v565 = vpack.c.b16 %v417, %v415
    %v566 = vpack.c.b16 %v418, %v416
    %v567 = vpack.c.b16 %v421, %v419
    %v568 = vpack.c.b16 %v422, %v420
    %v569 = vpack.c.b16 %v425, %v423
    %v570 = vpack.c.b16 %v426, %v424
    %v571 = vpack.c.b16 %v429, %v427
    %v572 = vpack.c.b16 %v430, %v428
    %v573 = vpack.c.b16 %v433, %v431
    %v574 = vpack.c.b16 %v434, %v432
    %v575 = vpack.c.b16 %v437, %v435
    %v576 = vpack.c.b16 %v438, %v436
    %v577 = vpack.c.b16 %v441, %v439
    %v578 = vpack.c.b16 %v442, %v440
    %v579 = vpack.c.b16 %v445, %v443
    %v580 = vpack.c.b16 %v446, %v444
    %v581 = vpack.c.b16 %v449, %v447
    %v582 = vpack.c.b16 %v450, %v448
    %v583 = vpack.c.b16 %v453, %v451
    %v584 = vpack.c.b16 %v454, %v452
    %v585 = vpack.c.b16 %v457, %v455
    %v586 = vpack.c.b16 %v458, %v456
    %v587 = vpack.c.b16 %v461, %v459
    %v588 = vpack.c.b16 %v462, %v460
    %v589 = vpack.c.b16 %v465, %v463
    %v590 = vpack.c.b16 %v466, %v464
    %v591 = vpack.c.b16 %v469, %v467
    %v592 = vpack.c.b16 %v470, %v468
    %v593 = vpack.c.b16 %v473, %v471
    %v594 = vpack.c.b16 %v474, %v472
    %v595 = vpack.c.b16 %v477, %v475
    %v596 = vpack.c.b16 %v478, %v476
    %v597 = vpack.c.b16 %v481, %v479
    %v598 = vpack.c.b16 %v482, %v480
    %v599 = vpack.c.b16 %v485, %v483
    %v600 = vpack.c.b16 %v486, %v484
    %v601 = vpack.c.b16 %v489, %v487
    %v602 = vpack.c.b16 %v490, %v488
    %v603 = vpack.c.b16 %v493, %v491
    %v604 = vpack.c.b16 %v494, %v492
    %v605 = vpack.c.b16 %v497, %v495
    %v606 = vpack.c.b16 %v498, %v496
    %v607 = vpack.c.b16 %v501, %v499
    %v608 = vpack.c.b16 %v502, %v500
    %v609 = vpack.c.b16 %v505, %v503
    %v610 = vpack.c.b16 %v506, %v504
    %v611 = vpack.c.b16 %v509, %v507
    %v612 = vpack.c.b16 %v510, %v508
    %v613 = vpack.c.b16 %v513, %v511
    %v614 = vpack.c.b16 %v514, %v512
    %v615 = vpack.c.b16 %v517, %v515
    %v616 = vpack.c.b16 %v518, %v516
    %vm715 = vcmask 130048
    %v717 = vsel %vm715, %v218, 0
    %719 = vmatprep.subr.bf16.mxu0 %v520
    %720 = vmatpush1.bf16.msra.mxu0 %v519
    %721 = vmatprep.subr.bf16.mxu0 %v522
    %722 = vmatpush1.bf16.msra.mxu0 %v521
    %723 = vmatprep.subr.bf16.mxu0 %v524
    %724 = vmatpush1.bf16.msra.mxu0 %v523
    %725 = vmatprep.subr.bf16.mxu0 %v526
    %726 = vmatpush1.bf16.msra.mxu0 %v525
    %727 = vmatprep.subr.bf16.mxu0 %v528
    %728 = vmatpush1.bf16.msra.mxu0 %v527
    %729 = vmatprep.subr.bf16.mxu0 %v530
    %730 = vmatpush1.bf16.msra.mxu0 %v529
    %731 = vmatprep.subr.bf16.mxu0 %v532
    %732 = vmatpush1.bf16.msra.mxu0 %v531
    %733 = vmatprep.subr.bf16.mxu0 %v534
    %734 = vmatpush1.bf16.msra.mxu0 %v533
    %735 = vmatprep.subr.bf16.mxu0 %v536
    %736 = vmatpush1.bf16.msra.mxu0 %v535
    %737 = vmatprep.subr.bf16.mxu0 %v538
    %738 = vmatpush1.bf16.msra.mxu0 %v537
    %739 = vmatprep.subr.bf16.mxu0 %v540
    %740 = vmatpush1.bf16.msra.mxu0 %v539
    %741 = vmatprep.subr.bf16.mxu0 %v542
    %742 = vmatpush1.bf16.msra.mxu0 %v541
    %743 = vmatprep.subr.bf16.mxu0 %v544
    %744 = vmatpush1.bf16.msra.mxu0 %v543
    %745 = vmatprep.subr.bf16.mxu0 %v546
    %746 = vmatpush1.bf16.msra.mxu0 %v545
    %747 = vmatprep.subr.bf16.mxu0 %v548
    %748 = vmatpush1.bf16.msra.mxu0 %v547
    %749 = vmatprep.subr.bf16.mxu0 %v550
    %750 = vmatpush1.bf16.msra.mxu0 %v549
    %751 = vmatprep.mubr.bf16.mxu0 %v213
    %752 = vmatmul.mubr.bf16.gmra.mrb[0].mxu0 %v212
    %v753 = vpop.f32.mrb[0].mxu0
    %v754 = vadd.f32 %v183, %v753
    %v755 = vpop.f32.mrb[0].mxu0
    %v756 = vadd.f32 %v187, %v755
    %v757 = vpop.f32.mrb[0].mxu0
    %v758 = vadd.f32 %v183, %v757
    %v759 = vpop.f32.mrb[0].mxu0
    %v760 = vadd.f32 %v187, %v759
    %761 = vdwg.mxu0
    %762 = vmatprep.subr.bf16.mxu0 %v552
    %763 = vmatpush1.bf16.msra.mxu0 %v551
    %764 = vmatprep.subr.bf16.mxu0 %v554
    %765 = vmatpush1.bf16.msra.mxu0 %v553
    %766 = vmatprep.subr.bf16.mxu0 %v556
    %767 = vmatpush1.bf16.msra.mxu0 %v555
    %768 = vmatprep.subr.bf16.mxu0 %v558
    %769 = vmatpush1.bf16.msra.mxu0 %v557
    %770 = vmatprep.subr.bf16.mxu0 %v560
    %771 = vmatpush1.bf16.msra.mxu0 %v559
    %772 = vmatprep.subr.bf16.mxu0 %v562
    %773 = vmatpush1.bf16.msra.mxu0 %v561
    %774 = vmatprep.subr.bf16.mxu0 %v564
    %775 = vmatpush1.bf16.msra.mxu0 %v563
    %776 = vmatprep.subr.bf16.mxu0 %v566
    %777 = vmatpush1.bf16.msra.mxu0 %v565
    %778 = vmatprep.subr.bf16.mxu0 %v568
    %779 = vmatpush1.bf16.msra.mxu0 %v567
    %780 = vmatprep.subr.bf16.mxu0 %v570
    %781 = vmatpush1.bf16.msra.mxu0 %v569
    %782 = vmatprep.subr.bf16.mxu0 %v572
    %783 = vmatpush1.bf16.msra.mxu0 %v571
    %784 = vmatprep.subr.bf16.mxu0 %v574
    %785 = vmatpush1.bf16.msra.mxu0 %v573
    %786 = vmatprep.subr.bf16.mxu0 %v576
    %787 = vmatpush1.bf16.msra.mxu0 %v575
    %788 = vmatprep.subr.bf16.mxu0 %v578
    %789 = vmatpush1.bf16.msra.mxu0 %v577
    %790 = vmatprep.subr.bf16.mxu0 %v580
    %791 = vmatpush1.bf16.msra.mxu0 %v579
    %792 = vmatprep.subr.bf16.mxu0 %v582
    %793 = vmatpush1.bf16.msra.mxu0 %v581
    %794 = vmatprep.mubr.bf16.mxu0 %v215
    %795 = vmatmul.mubr.bf16.gmra.mrb[0].mxu0 %v214
    %v796 = vpop.f32.mrb[0].mxu0
    %v797 = vadd.f32 %v754, %v796
    %v798 = vpop.f32.mrb[0].mxu0
    %v799 = vadd.f32 %v756, %v798
    %v800 = vpop.f32.mrb[0].mxu0
    %v801 = vadd.f32 %v758, %v800
    %v802 = vpop.f32.mrb[0].mxu0
    %v803 = vadd.f32 %v760, %v802
    %804 = vdwg.mxu0
    %805 = vmatprep.subr.bf16.mxu0 %v584
    %806 = vmatpush1.bf16.msra.mxu0 %v583
    %807 = vmatprep.subr.bf16.mxu0 %v586
    %808 = vmatpush1.bf16.msra.mxu0 %v585
    %809 = vmatprep.subr.bf16.mxu0 %v588
    %810 = vmatpush1.bf16.msra.mxu0 %v587
    %811 = vmatprep.subr.bf16.mxu0 %v590
    %812 = vmatpush1.bf16.msra.mxu0 %v589
    %813 = vmatprep.subr.bf16.mxu0 %v592
    %814 = vmatpush1.bf16.msra.mxu0 %v591
    %815 = vmatprep.subr.bf16.mxu0 %v594
    %816 = vmatpush1.bf16.msra.mxu0 %v593
    %817 = vmatprep.subr.bf16.mxu0 %v596
    %818 = vmatpush1.bf16.msra.mxu0 %v595
    %819 = vmatprep.subr.bf16.mxu0 %v598
    %820 = vmatpush1.bf16.msra.mxu0 %v597
    %821 = vmatprep.subr.bf16.mxu0 %v600
    %822 = vmatpush1.bf16.msra.mxu0 %v599
    %823 = vmatprep.subr.bf16.mxu0 %v602
    %824 = vmatpush1.bf16.msra.mxu0 %v601
    %825 = vmatprep.subr.bf16.mxu0 %v604
    %826 = vmatpush1.bf16.msra.mxu0 %v603
    %827 = vmatprep.subr.bf16.mxu0 %v606
    %828 = vmatpush1.bf16.msra.mxu0 %v605
    %829 = vmatprep.subr.bf16.mxu0 %v608
    %830 = vmatpush1.bf16.msra.mxu0 %v607
    %831 = vmatprep.subr.bf16.mxu0 %v610
    %832 = vmatpush1.bf16.msra.mxu0 %v609
    %833 = vmatprep.subr.bf16.mxu0 %v612
    %834 = vmatpush1.bf16.msra.mxu0 %v611
    %835 = vmatprep.subr.bf16.mxu0 %v614
    %836 = vmatpush1.bf16.msra.mxu0 %v613
    %837 = vmatprep.mubr.bf16.mxu0 %v217
    %838 = vmatmul.mubr.bf16.gmra.mrb[0].mxu0 %v216
    %v839 = vpop.f32.mrb[0].mxu0
    %v840 = vadd.f32 %v797, %v839
    %v841 = vpop.f32.mrb[0].mxu0
    %v842 = vadd.f32 %v799, %v841
    %v843 = vpop.f32.mrb[0].mxu0
    %v844 = vadd.f32 %v801, %v843
    %v845 = vpop.f32.mrb[0].mxu0
    %v846 = vadd.f32 %v803, %v845
    %847 = vdwg.mxu0
    %848 = vmatprep.subr.bf16.mxu0 %v616
    %849 = vmatpush1.bf16.msra.mxu0 %v615
    %850 = vmatprep.subr.bf16.mxu0 0
    %851 = vmatpush1.bf16.msra.mxu0 0
    %852 = vmatprep.subr.bf16.mxu0 0
    %853 = vmatpush1.bf16.msra.mxu0 0
    %854 = vmatprep.subr.bf16.mxu0 0
    %855 = vmatpush1.bf16.msra.mxu0 0
    %856 = vmatprep.subr.bf16.mxu0 0
    %857 = vmatpush1.bf16.msra.mxu0 0
    %858 = vmatprep.subr.bf16.mxu0 0
    %859 = vmatpush1.bf16.msra.mxu0 0
    %860 = vmatprep.subr.bf16.mxu0 0
    %861 = vmatpush1.bf16.msra.mxu0 0
    %862 = vmatprep.subr.bf16.mxu0 0
    %863 = vmatpush1.bf16.msra.mxu0 0
    %864 = vmatprep.subr.bf16.mxu0 0
    %865 = vmatpush1.bf16.msra.mxu0 0
    %866 = vmatprep.subr.bf16.mxu0 0
    %867 = vmatpush1.bf16.msra.mxu0 0
    %868 = vmatprep.subr.bf16.mxu0 0
    %869 = vmatpush1.bf16.msra.mxu0 0
    %870 = vmatprep.subr.bf16.mxu0 0
    %871 = vmatpush1.bf16.msra.mxu0 0
    %872 = vmatprep.subr.bf16.mxu0 0
    %873 = vmatpush1.bf16.msra.mxu0 0
    %874 = vmatprep.subr.bf16.mxu0 0
    %875 = vmatpush1.bf16.msra.mxu0 0
    %876 = vmatprep.subr.bf16.mxu0 0
    %877 = vmatpush1.bf16.msra.mxu0 0
    %878 = vmatprep.subr.bf16.mxu0 0
    %879 = vmatpush1.bf16.msra.mxu0 0
    %880 = vmatprep.mubr.bf16.mxu0 0
    %881 = vmatmul.mubr.bf16.gmra.mrb[0].mxu0 %v717
    %v882 = vpop.f32.mrb[0].mxu0
    %v883 = vadd.f32 %v840, %v882
    %v884 = vpop.f32.mrb[0].mxu0
    %v885 = vadd.f32 %v842, %v884
    %v886 = vpop.f32.mrb[0].mxu0
    %v887 = vadd.f32 %v844, %v886
    %v888 = vpop.f32.mrb[0].mxu0
    %v889 = vadd.f32 %v846, %v888
    %890 = vdwg.mxu0
    %v891 = vmax.f32 %v883, 0.0
    %v892 = vmax.f32 %v885, 0.0
    %v893 = vmax.f32 %v887, 0.0
    %v894 = vmax.f32 %v889, 0.0
    %v895 = vpack.c.bf16 %v893, %v891
    %v896 = vpack.c.bf16 %v894, %v892
    %v897 = vld [vmem:[%s3] sm:$0xf]
    %v898 = vld [vmem:[%s3 + $0x4] sm:$0xf]
    %v899 = vld [vmem:[%s3 + $0x8] sm:$0xf]
    %v900 = vld [vmem:[%s3 + $0xc] sm:$0xf]
    %v901 = vld [vmem:[%s3 + $0x10] sm:$0xf]
    %v902 = vld [vmem:[%s3 + $0x14] sm:$0xf]
    %v903 = vld [vmem:[%s3 + $0x18] sm:$0xf]
    %v904 = vld [vmem:[%s3 + $0x1c] sm:$0xf]
    %v905 = vld [vmem:[%s3 + $0x20] sm:$0xf]
    %v906 = vld [vmem:[%s3 + $0x24] sm:$0xf]
    %v907 = vld [vmem:[%s3 + $0x28] sm:$0xf]
    %v908 = vld [vmem:[%s3 + $0x2c] sm:$0xf]
    %v909 = vld [vmem:[%s3 + $0x30] sm:$0xf]
    %v910 = vld [vmem:[%s3 + $0x34] sm:$0xf]
    %v911 = vld [vmem:[%s3 + $0x38] sm:$0xf]
    %v912 = vld [vmem:[%s3 + $0x3c] sm:$0xf]
    %v913 = vld [vmem:[%s3 + $0x40] sm:$0xf]
    %v914 = vld [vmem:[%s3 + $0x44] sm:$0xf]
    %v915 = vld [vmem:[%s3 + $0x48] sm:$0xf]
    %v916 = vld [vmem:[%s3 + $0x4c] sm:$0xf]
    %v917 = vld [vmem:[%s3 + $0x50] sm:$0xf]
    %v918 = vld [vmem:[%s3 + $0x54] sm:$0xf]
    %v919 = vld [vmem:[%s3 + $0x58] sm:$0xf]
    %v920 = vld [vmem:[%s3 + $0x5c] sm:$0xf]
    %v921 = vld [vmem:[%s3 + $0x60] sm:$0xf]
    %v922 = vld [vmem:[%s3 + $0x64] sm:$0xf]
    %v923 = vld [vmem:[%s3 + $0x68] sm:$0xf]
    %v924 = vld [vmem:[%s3 + $0x6c] sm:$0xf]
    %v925 = vld [vmem:[%s3 + $0x70] sm:$0xf]
    %v926 = vld [vmem:[%s3 + $0x74] sm:$0xf]
    %v927 = vld [vmem:[%s3 + $0x78] sm:$0xf]
    %v928 = vld [vmem:[%s3 + $0x7c] sm:$0xf]
    %v929 = vld [vmem:[%s4] sm:$0x1]
    %v931 = vlaneseq
    %v932 = vshrl.u32 %v931, 7
    %v933 = vsub.s32 0, %v932
    %v934 = vrot.slane %v929, %v933
    %v968 = vunpack.c.l.b16 %v897
    %v969 = vunpack.c.l.b16 %v898
    %v970 = vunpack.c.l.b16 %v899
    %v971 = vunpack.c.l.b16 %v900
    %v972 = vunpack.c.l.b16 %v901
    %v973 = vunpack.c.l.b16 %v902
    %v974 = vunpack.c.l.b16 %v903
    %v975 = vunpack.c.l.b16 %v904
    %v976 = vunpack.c.l.b16 %v905
    %v977 = vunpack.c.l.b16 %v906
    %v978 = vunpack.c.l.b16 %v907
    %v979 = vunpack.c.l.b16 %v908
    %v980 = vunpack.c.l.b16 %v909
    %v981 = vunpack.c.l.b16 %v910
    %v982 = vunpack.c.l.b16 %v911
    %v983 = vunpack.c.l.b16 %v912
    %v984 = vunpack.c.l.b16 %v913
    %v985 = vunpack.c.l.b16 %v914
    %v986 = vunpack.c.l.b16 %v915
    %v987 = vunpack.c.l.b16 %v916
    %v988 = vunpack.c.l.b16 %v917
    %v989 = vunpack.c.l.b16 %v918
    %v990 = vunpack.c.l.b16 %v919
    %v991 = vunpack.c.l.b16 %v920
    %v992 = vunpack.c.l.b16 %v921
    %v993 = vunpack.c.l.b16 %v922
    %v994 = vunpack.c.l.b16 %v923
    %v995 = vunpack.c.l.b16 %v924
    %v996 = vunpack.c.l.b16 %v925
    %v997 = vunpack.c.l.b16 %v926
    %v998 = vunpack.c.l.b16 %v927
    %v999 = vunpack.c.l.b16 %v928
    %v1000 = vpack.c.b16 %v969, %v968
    %v1001 = vpack.c.b16 %v971, %v970
    %v1002 = vpack.c.b16 %v973, %v972
    %v1003 = vpack.c.b16 %v975, %v974
    %v1004 = vpack.c.b16 %v977, %v976
    %v1005 = vpack.c.b16 %v979, %v978
    %v1006 = vpack.c.b16 %v981, %v980
    %v1007 = vpack.c.b16 %v983, %v982
    %v1008 = vpack.c.b16 %v985, %v984
    %v1009 = vpack.c.b16 %v987, %v986
    %v1010 = vpack.c.b16 %v989, %v988
    %v1011 = vpack.c.b16 %v991, %v990
    %v1012 = vpack.c.b16 %v993, %v992
    %v1013 = vpack.c.b16 %v995, %v994
    %v1014 = vpack.c.b16 %v997, %v996
    %v1015 = vpack.c.b16 %v999, %v998
    %1032 = vmatprep.subr.bf16.mxu0 0
    %1033 = vmatpush1.bf16.msra.mxu0 %v1000
    %1034 = vmatprep.subr.bf16.mxu0 0
    %1035 = vmatpush1.bf16.msra.mxu0 %v1001
    %1036 = vmatprep.subr.bf16.mxu0 0
    %1037 = vmatpush1.bf16.msra.mxu0 %v1002
    %1038 = vmatprep.subr.bf16.mxu0 0
    %1039 = vmatpush1.bf16.msra.mxu0 %v1003
    %1040 = vmatprep.subr.bf16.mxu0 0
    %1041 = vmatpush1.bf16.msra.mxu0 %v1004
    %1042 = vmatprep.subr.bf16.mxu0 0
    %1043 = vmatpush1.bf16.msra.mxu0 %v1005
    %1044 = vmatprep.subr.bf16.mxu0 0
    %1045 = vmatpush1.bf16.msra.mxu0 %v1006
    %1046 = vmatprep.subr.bf16.mxu0 0
    %1047 = vmatpush1.bf16.msra.mxu0 %v1007
    %1048 = vmatprep.subr.bf16.mxu0 0
    %1049 = vmatpush1.bf16.msra.mxu0 %v1008
    %1050 = vmatprep.subr.bf16.mxu0 0
    %1051 = vmatpush1.bf16.msra.mxu0 %v1009
    %1052 = vmatprep.subr.bf16.mxu0 0
    %1053 = vmatpush1.bf16.msra.mxu0 %v1010
    %1054 = vmatprep.subr.bf16.mxu0 0
    %1055 = vmatpush1.bf16.msra.mxu0 %v1011
    %1056 = vmatprep.subr.bf16.mxu0 0
    %1057 = vmatpush1.bf16.msra.mxu0 %v1012
    %1058 = vmatprep.subr.bf16.mxu0 0
    %1059 = vmatpush1.bf16.msra.mxu0 %v1013
    %1060 = vmatprep.subr.bf16.mxu0 0
    %1061 = vmatpush1.bf16.msra.mxu0 %v1014
    %1062 = vmatprep.subr.bf16.mxu0 0
    %1063 = vmatpush1.bf16.msra.mxu0 %v1015
    %1064 = vmatprep.mubr.bf16.mxu0 %v896
    %1065 = vmatmul.mubr.bf16.gmra.mrb[0].mxu0 %v895
    %v1066 = vpop.f32.mrb[0].mxu0
    %v1067 = vadd.f32 %v934, %v1066
    %v1068 = vpop.f32.mrb[0].mxu0
    %v1069 = vpop.f32.mrb[0].mxu0
    %v1070 = vadd.f32 %v934, %v1069
    %v1071 = vpop.f32.mrb[0].mxu0
    %1072 = vdwg.mxu0
    %v1073 = vmax.f32 %v1067, 0.0
    %v1074 = vmax.f32 %v1070, 0.0
    %v1075 = vpack.c.bf16 %v1074, %v1073
    %v1076 = vld [vmem:[#allocation4] sm:$0xf]
    %v1077 = vld [vmem:[#allocation4 + $0x4] sm:$0xf]
    %v1078 = vld [vmem:[#allocation4 + $0x8] sm:$0xf]
    %v1079 = vld [vmem:[#allocation4 + $0xc] sm:$0xf]
    %v1080 = vld [vmem:[#allocation4 + $0x10] sm:$0xf]
    %v1081 = vld [vmem:[#allocation4 + $0x14] sm:$0xf]
    %v1082 = vld [vmem:[#allocation4 + $0x18] sm:$0xf]
    %v1083 = vld [vmem:[#allocation4 + $0x1c] sm:$0xf]
    %v1084 = vld [vmem:[#allocation4 + $0x20] sm:$0xf]
    %v1085 = vld [vmem:[#allocation4 + $0x24] sm:$0xf]
    %v1086 = vld [vmem:[#allocation4 + $0x28] sm:$0xf]
    %v1087 = vld [vmem:[#allocation4 + $0x2c] sm:$0xf]
    %v1088 = vld [vmem:[#allocation4 + $0x30] sm:$0xf]
    %v1089 = vld [vmem:[#allocation4 + $0x34] sm:$0xf]
    %v1090 = vld [vmem:[#allocation4 + $0x38] sm:$0xf]
    %v1091 = vld [vmem:[#allocation4 + $0x3c] sm:$0xf]
    %v1092 = vld [vmem:[#allocation6] sm:$0x1]
    %v1094 = vlaneseq
    %v1095 = vshrl.u32 %v1094, 7
    %v1096 = vsub.s32 0, %v1095
    %v1097 = vrot.slane %v1092, %v1096
    %v1115 = vunpack.c.l.b16 %v1076
    %v1116 = vunpack.c.l.b16 %v1077
    %v1117 = vunpack.c.l.b16 %v1078
    %v1118 = vunpack.c.l.b16 %v1079
    %v1119 = vunpack.c.l.b16 %v1080
    %v1120 = vunpack.c.l.b16 %v1081
    %v1121 = vunpack.c.l.b16 %v1082
    %v1122 = vunpack.c.l.b16 %v1083
    %v1123 = vunpack.c.l.b16 %v1084
    %v1124 = vunpack.c.l.b16 %v1085
    %v1125 = vunpack.c.l.b16 %v1086
    %v1126 = vunpack.c.l.b16 %v1087
    %v1127 = vunpack.c.l.b16 %v1088
    %v1128 = vunpack.c.l.b16 %v1089
    %v1129 = vunpack.c.l.b16 %v1090
    %v1130 = vunpack.c.l.b16 %v1091
    %v1131 = vpack.c.b16 %v1116, %v1115
    %v1132 = vpack.c.b16 %v1118, %v1117
    %v1133 = vpack.c.b16 %v1120, %v1119
    %v1134 = vpack.c.b16 %v1122, %v1121
    %v1135 = vpack.c.b16 %v1124, %v1123
    %v1136 = vpack.c.b16 %v1126, %v1125
    %v1137 = vpack.c.b16 %v1128, %v1127
    %v1138 = vpack.c.b16 %v1130, %v1129
    %1147 = vmatprep.subr.bf16.mxu0 0
    %1148 = vmatpush1.bf16.msra.mxu0 %v1131
    %1149 = vmatprep.subr.bf16.mxu0 0
    %1150 = vmatpush1.bf16.msra.mxu0 %v1132
    %1151 = vmatprep.subr.bf16.mxu0 0
    %1152 = vmatpush1.bf16.msra.mxu0 %v1133
    %1153 = vmatprep.subr.bf16.mxu0 0
    %1154 = vmatpush1.bf16.msra.mxu0 %v1134
    %1155 = vmatprep.subr.bf16.mxu0 0
    %1156 = vmatpush1.bf16.msra.mxu0 %v1135
    %1157 = vmatprep.subr.bf16.mxu0 0
    %1158 = vmatpush1.bf16.msra.mxu0 %v1136
    %1159 = vmatprep.subr.bf16.mxu0 0
    %1160 = vmatpush1.bf16.msra.mxu0 %v1137
    %1161 = vmatprep.subr.bf16.mxu0 0
    %1162 = vmatpush1.bf16.msra.mxu0 %v1138
    %1163 = vmatprep.subr.bf16.mxu0 0
    %1164 = vmatpush1.bf16.msra.mxu0 0
    %1165 = vmatprep.subr.bf16.mxu0 0
    %1166 = vmatpush1.bf16.msra.mxu0 0
    %1167 = vmatprep.subr.bf16.mxu0 0
    %1168 = vmatpush1.bf16.msra.mxu0 0
    %1169 = vmatprep.subr.bf16.mxu0 0
    %1170 = vmatpush1.bf16.msra.mxu0 0
    %1171 = vmatprep.subr.bf16.mxu0 0
    %1172 = vmatpush1.bf16.msra.mxu0 0
    %1173 = vmatprep.subr.bf16.mxu0 0
    %1174 = vmatpush1.bf16.msra.mxu0 0
    %1175 = vmatprep.subr.bf16.mxu0 0
    %1176 = vmatpush1.bf16.msra.mxu0 0
    %1177 = vmatprep.subr.bf16.mxu0 0
    %1178 = vmatpush1.bf16.msra.mxu0 0
    %1179 = vmatprep.mubr.bf16.mxu0 0
    %1180 = vmatmul.mubr.bf16.gmra.mrb[0].mxu0 %v1075
    %v1181 = vpop.f32.mrb[0].mxu0
    %v1182 = vadd.f32 %v1097, %v1181
    %v1183 = vpop.f32.mrb[0].mxu0
    %v1184 = vpop.f32.mrb[0].mxu0
    %v1185 = vadd.f32 %v1097, %v1184
    %v1186 = vpop.f32.mrb[0].mxu0
    %1187 = vdwg.mxu0
    %v1188 = vmax.f32 %v1182, 0.0
    %v1189 = vmax.f32 %v1185, 0.0
    %v1190 = vpack.c.bf16 %v1189, %v1188
    %v1191 = vld [vmem:[%s7] sm:$0xf]
    %v1192 = vld [vmem:[%s7 + $0x4] sm:$0xf]
    %v1193 = vld [vmem:[%s7 + $0x8] sm:$0xf]
    %v1194 = vld [vmem:[%s7 + $0xc] sm:$0xf]
    %v1195 = vld [vmem:[%s7 + $0x10] sm:$0xf]
    %v1196 = vld [vmem:[%s7 + $0x14] sm:$0xf]
    %v1197 = vld [vmem:[%s7 + $0x18] sm:$0xf]
    %v1198 = vld [vmem:[%s7 + $0x1c] sm:$0xf]
    %v1199 = vld [vmem:[%s7 + $0x20] sm:$0xf]
    %v1200 = vld [vmem:[%s7 + $0x24] sm:$0xf]
    %v1201 = vld [vmem:[%s7 + $0x28] sm:$0xf]
    %v1202 = vld [vmem:[%s7 + $0x2c] sm:$0xf]
    %v1203 = vld [vmem:[%s7 + $0x30] sm:$0xf]
    %v1204 = vld [vmem:[%s7 + $0x34] sm:$0xf]
    %v1205 = vld [vmem:[%s7 + $0x38] sm:$0xf]
    %v1206 = vld [vmem:[%s7 + $0x3c] sm:$0xf]
    %v1207 = vld [vmem:[%s8] sm:$0x1]
    %v1209 = vlaneseq
    %v1210 = vshrl.u32 %v1209, 7
    %v1211 = vsub.s32 0, %v1210
    %v1212 = vrot.slane %v1207, %v1211
    %v1230 = vunpack.c.l.b16 %v1191
    %v1231 = vunpack.c.l.b16 %v1192
    %v1232 = vunpack.c.l.b16 %v1193
    %v1233 = vunpack.c.l.b16 %v1194
    %v1234 = vunpack.c.l.b16 %v1195
    %v1235 = vunpack.c.l.b16 %v1196
    %v1236 = vunpack.c.l.b16 %v1197
    %v1237 = vunpack.c.l.b16 %v1198
    %v1238 = vunpack.c.l.b16 %v1199
    %v1239 = vunpack.c.l.b16 %v1200
    %v1240 = vunpack.c.l.b16 %v1201
    %v1241 = vunpack.c.l.b16 %v1202
    %v1242 = vunpack.c.l.b16 %v1203
    %v1243 = vunpack.c.l.b16 %v1204
    %v1244 = vunpack.c.l.b16 %v1205
    %v1245 = vunpack.c.l.b16 %v1206
    %v1246 = vpack.c.b16 %v1231, %v1230
    %v1247 = vpack.c.b16 %v1233, %v1232
    %v1248 = vpack.c.b16 %v1235, %v1234
    %v1249 = vpack.c.b16 %v1237, %v1236
    %v1250 = vpack.c.b16 %v1239, %v1238
    %v1251 = vpack.c.b16 %v1241, %v1240
    %v1252 = vpack.c.b16 %v1243, %v1242
    %v1253 = vpack.c.b16 %v1245, %v1244
    %1262 = vmatprep.subr.bf16.mxu0 0
    %1263 = vmatpush1.bf16.msra.mxu0 %v1246
    %1264 = vmatprep.subr.bf16.mxu0 0
    %1265 = vmatpush1.bf16.msra.mxu0 %v1247
    %1266 = vmatprep.subr.bf16.mxu0 0
    %1267 = vmatpush1.bf16.msra.mxu0 %v1248
    %1268 = vmatprep.subr.bf16.mxu0 0
    %1269 = vmatpush1.bf16.msra.mxu0 %v1249
    %1270 = vmatprep.subr.bf16.mxu0 0
    %1271 = vmatpush1.bf16.msra.mxu0 %v1250
    %1272 = vmatprep.subr.bf16.mxu0 0
    %1273 = vmatpush1.bf16.msra.mxu0 %v1251
    %1274 = vmatprep.subr.bf16.mxu0 0
    %1275 = vmatpush1.bf16.msra.mxu0 %v1252
    %1276 = vmatprep.subr.bf16.mxu0 0
    %1277 = vmatpush1.bf16.msra.mxu0 %v1253
    %1278 = vmatprep.subr.bf16.mxu0 0
    %1279 = vmatpush1.bf16.msra.mxu0 0
    %1280 = vmatprep.subr.bf16.mxu0 0
    %1281 = vmatpush1.bf16.msra.mxu0 0
    %1282 = vmatprep.subr.bf16.mxu0 0
    %1283 = vmatpush1.bf16.msra.mxu0 0
    %1284 = vmatprep.subr.bf16.mxu0 0
    %1285 = vmatpush1.bf16.msra.mxu0 0
    %1286 = vmatprep.subr.bf16.mxu0 0
    %1287 = vmatpush1.bf16.msra.mxu0 0
    %1288 = vmatprep.subr.bf16.mxu0 0
    %1289 = vmatpush1.bf16.msra.mxu0 0
    %1290 = vmatprep.subr.bf16.mxu0 0
    %1291 = vmatpush1.bf16.msra.mxu0 0
    %1292 = vmatprep.subr.bf16.mxu0 0
    %1293 = vmatpush1.bf16.msra.mxu0 0
    %1294 = vmatprep.mubr.bf16.mxu0 0
    %1295 = vmatmul.mubr.bf16.gmra.mrb[0].mxu0 %v1190
    %v1296 = vpop.f32.mrb[0].mxu0
    %v1297 = vadd.f32 %v1212, %v1296
    %v1298 = vpop.f32.mrb[0].mxu0
    %v1299 = vpop.f32.mrb[0].mxu0
    %v1300 = vadd.f32 %v1212, %v1299
    %v1301 = vpop.f32.mrb[0].mxu0
    %1302 = vdwg.mxu0
    %v1303 = vlaneseq
    %v1304 = vand.u32 %v1303, 127
    %vm1305 = vcmp.lt.s32.totalorder %v1304, 10
    %v1306 = vsel %vm1305, %v1297, -inf
    %v1307 = vsel %vm1305, %v1300, -inf
    %1308 = vmax.xlane.f32.xlu0 %v1306
    %v1309 = vpop.xlane.xlu0 %1308
    %1310 = vmax.xlane.f32.xlu0 %v1307
    %v1311 = vpop.xlane.xlu0 %1310
    %v1312 = vsub.f32 %v1306, %v1309
    %v1313 = vsub.f32 %v1307, %v1311
    %v1314 = vmul.f32 %v1312, 1.442695
    %v1315 = vpow.pop %v1314
    %v1316 = vmul.f32 %v1313, 1.442695
    %v1317 = vpow.pop %v1316
    %1318 = vadd.xlane.f32.xlu0 %v1315
    %v1319 = vpop.xlane.xlu0 %1318
    %1320 = vadd.xlane.f32.xlu0 %v1317
    %v1321 = vpop.xlane.xlu0 %1320
    %v1322 = vlog2.pop %v1319
    %v1323 = vmul.f32 %v1322, 0.6931472
    %v1324 = vlog2.pop %v1321
    %v1325 = vmul.f32 %v1324, 0.6931472
    %v1326 = vsub.f32 %v1312, %v1323
    %v1327 = vsub.f32 %v1313, %v1325
    %v1328 = vsel %vm1305, %v1326, 0.0
    %v1329 = vsel %vm1305, %v1327, 0.0
    %1330 = vst [vmem:[%s9] sm:$0xff] %v1328
    %1331 = vst [vmem:[%s9 + $0x8] sm:$0xff] %v1329
    // Predicated region
    $region50: #{net_forward.1} parent=1 // pred_check
      _
    $region51: #{net_forward.1} parent=1 // pred_check_branch
      %1333 = sbr.rel (0) target = $region53
    $region52: #{net_forward.1} parent=1 // pred_region
      _
    $region53: #{net_forward.1} parent=1 // pred_fallthru
      _
    // Predicated region
    $region54: #{net_forward.1} parent=1 // pred_check
      _
    $region55: #{net_forward.1} parent=1 // pred_check_branch
      %1335 = sbr.rel (0) target = $region57
    $region56: #{net_forward.1} parent=1 // pred_region
      _
    $region57: #{net_forward.1} parent=1 // pred_fallthru
      _
    %1336 = vsyncpa [#allocation3], 1
    %1337 = vsyncpa [#allocation5], 1

</llo_original>
